<compile_context>
chip_gen: v7x
topology: tpu7x:2x2x1
jax: 0.10.0
libtpu: 0.0.40
codegen_flags: <defaults>
</compile_context>

<pallas_src>
import functools

import jax
import jax.numpy as jnp
from jax.experimental import pallas as pl
from jax.experimental.pallas import tpu as pltpu

NSTEPS = 8  # fixed-step RK4 steps over t in [0, 1]
_HP = jax.lax.Precision.HIGHEST


def _node_linear_kernel(x_ref, w1_ref, b1_ref, w2_ref, b2_ref, out_ref):
    # x_ref:   (F, TB)  block of x^T -- B*T rows on the lane axis (lane-dense)
    # w1_ref:  (H, F)   fused (penultimate o RK4-transition) weight, (out, in)
    # b1_ref:  (H, 1)   fused bias (broadcast along lanes)
    # w2_ref:  (K, H)   final weight, (out, in)
    # b2_ref:  (K, 1)
    # out_ref: (K, TB)  lane-dense output block
    x = x_ref[...]
    p = jnp.dot(w1_ref[...], x, preferred_element_type=jnp.float32) + b1_ref[...]
    p = jnp.maximum(p, 0.0)
    out = jnp.dot(w2_ref[...], p, preferred_element_type=jnp.float32) + b2_ref[...]
    out_ref[...] = out.astype(out_ref.dtype)


def _rk4_affine_transition(w_ode, b_ode):
    """Collapse NSTEPS of fixed-step RK4 for dh/dt = W h + b into h <- A_tot h + c_tot.

    Exact algebraic rearrangement (the ODE func is affine); done in the wrapper
    with plain XLA on tiny (F, F) matrices at highest matmul precision.
    """
    F = w_ode.shape[0]
    dt = jnp.float32(1.0 / NSTEPS)
    eye = jnp.eye(F, dtype=jnp.float32)
    mm = functools.partial(jnp.matmul, precision=_HP)

    dtW = dt * w_ode.astype(jnp.float32)
    dtW2 = mm(dtW, dtW)
    dtW3 = mm(dtW2, dtW)
    dtW4 = mm(dtW3, dtW)
    # One RK4 step:  h <- A h + c
    A = eye + dtW + dtW2 / 2.0 + dtW3 / 6.0 + dtW4 / 24.0
    c = dt * mm(eye + dtW / 2.0 + dtW2 / 6.0 + dtW3 / 24.0,
                b_ode.astype(jnp.float32))
    # Compose NSTEPS steps:  h <- A_tot h + c_tot
    A_tot = eye
    c_tot = jnp.zeros((F,), jnp.float32)
    for _ in range(NSTEPS):
        c_tot = mm(A, c_tot) + c
        A_tot = mm(A, A_tot)
    return A_tot, c_tot


def node_linear_forward(x, params, *, row_block=None):
    """x: (B, T, F) float32. Returns (B, T, num_classes) float32."""
    w_ode, b_ode, w_pen, b_pen, w_fin, b_fin = params
    B, T, F = x.shape
    H = w_pen.shape[0]
    K = w_fin.shape[0]
    N = B * T

    # --- wrapper-side param prep (tiny, highest precision) -------------------
    A_tot, c_tot = _rk4_affine_transition(w_ode, b_ode)
    mm = functools.partial(jnp.matmul, precision=_HP)
    # Fuse the ODE transition into the penultimate Linear:
    #   relu(W_pen (A_tot x + c_tot) + b_pen) == relu(W1 x + b1)
    w1 = mm(w_pen.astype(jnp.float32), A_tot)                        # (H, F)
    b1 = (mm(w_pen.astype(jnp.float32), c_tot)
          + b_pen.astype(jnp.float32)).reshape(H, 1)                 # (H, 1)
    w2 = w_fin.astype(jnp.float32)                                   # (K, H)
    b2 = b_fin.astype(jnp.float32).reshape(K, 1)                     # (K, 1)

    # --- lane-dense layout: put B*T on the 128-lane (last) axis --------------
    x_t = x.reshape(N, F).T.astype(jnp.float32)                      # (F, N)

    n_min = 128 * pl.cdiv(N, 128)                # lane-aligned column count
    if row_block is None:
        row_block = min(1024, n_min)             # few, large blocks (v5e/v6e)
    row_block = max(128, 128 * pl.cdiv(row_block, 128))
    n_blocks = pl.cdiv(n_min, row_block)
    if n_blocks > 1 and n_blocks % 2 == 1:
        n_blocks += 1                            # even block count for v7x's 2 TCs
    Np = n_blocks * row_block
    if Np != N:
        x_t = jnp.pad(x_t, ((0, 0), (0, Np - N)))

    grid_spec = pltpu.PrefetchScalarGridSpec(
        num_scalar_prefetch=0,
        grid=(n_blocks,),
        in_specs=[
            pl.BlockSpec((F, row_block), lambda i: (0, i)),   # x^T column block
            pl.BlockSpec((H, F), lambda i: (0, 0)),           # fused W1 (resident)
            pl.BlockSpec((H, 1), lambda i: (0, 0)),           # fused b1
            pl.BlockSpec((K, H), lambda i: (0, 0)),           # final W2
            pl.BlockSpec((K, 1), lambda i: (0, 0)),           # final b2
        ],
        out_specs=pl.BlockSpec((K, row_block), lambda i: (0, i)),
    )

    out_t = pl.pallas_call(
        _node_linear_kernel,
        out_shape=jax.ShapeDtypeStruct((K, Np), jnp.float32),
        grid_spec=grid_spec,
        compiler_params=pltpu.CompilerParams(
            dimension_semantics=("parallel",)),
    )(x_t, w1, b1, w2, b2)

    return out_t[:, :N].T.reshape(B, T, K)


def node_linear_reference(x, params):
    """Pure-JAX step-by-step RK4 reference (mirrors the original semantics)."""
    w_ode, b_ode, w_pen, b_pen, w_fin, b_fin = params
    mm = functools.partial(jnp.matmul, precision=_HP)
    dt = 1.0 / NSTEPS

    def f(h):
        return mm(h, w_ode.T) + b_ode

    h = x.astype(jnp.float32)
    for _ in range(NSTEPS):
        k1 = f(h)
        k2 = f(h + 0.5 * dt * k1)
        k3 = f(h + 0.5 * dt * k2)
        k4 = f(h + dt * k3)
        h = h + (dt / 6.0) * (k1 + 2.0 * k2 + 2.0 * k3 + k4)
    p = jax.nn.relu(mm(h, w_pen.T) + b_pen)
    return mm(p, w_fin.T) + b_fin


def init_params(key, num_features, num_classes, hidden_size):
    """Parameters in PyTorch nn.Linear layout: W is (out_features, in_features)."""
    ks = jax.random.split(key, 6)
    w_ode = 0.1 * jax.random.normal(ks[0], (num_features, num_features), jnp.float32)
    b_ode = 0.1 * jax.random.normal(ks[1], (num_features,), jnp.float32)
    w_pen = 0.1 * jax.random.normal(ks[2], (hidden_size, num_features), jnp.float32)
    b_pen = 0.1 * jax.random.normal(ks[3], (hidden_size,), jnp.float32)
    w_fin = 0.1 * jax.random.normal(ks[4], (num_classes, hidden_size), jnp.float32)
    b_fin = 0.1 * jax.random.normal(ks[5], (num_classes,), jnp.float32)
    return (w_ode, b_ode, w_pen, b_pen, w_fin, b_fin)


if __name__ == "__main__":
    B, T, num_features = 2, 16, 4
    hidden_size, num_classes = 32, 6

    key = jax.random.PRNGKey(0)
    k_x, k_p = jax.random.split(key)
    x = jax.random.normal(k_x, (B, T, num_features), jnp.float32)
    params = init_params(k_p, num_features, num_classes, hidden_size)

    out = node_linear_forward(x, params)
    out = jax.block_until_ready(out)
    assert out.shape == (B, T, num_classes), out.shape
    assert jnp.all(jnp.isfinite(out))

    # Tolerance (not bit-exact) check: the affine-RK4 collapse reorders fp ops.
    ref = node_linear_reference(x, params)
    max_err = float(jnp.max(jnp.abs(out - ref)))
    assert max_err < 5e-4, f"max abs err {max_err}"

    print("KERNEL_OK")
</pallas_src>

<mosaic_0001>
module attributes {stable_mosaic.version = 11 : i64} {
  func.func @_node_linear_kernel(%arg0: i32, %arg1: memref<4x128xf32, #tpu.memory_space<vmem>>, %arg2: memref<32x4xf32, #tpu.memory_space<vmem>>, %arg3: memref<32x1xf32, #tpu.memory_space<vmem>>, %arg4: memref<6x32xf32, #tpu.memory_space<vmem>>, %arg5: memref<6x1xf32, #tpu.memory_space<vmem>>, %arg6: memref<6x128xf32, #tpu.memory_space<vmem>>) attributes {dimension_semantics = [#tpu.dimension_semantics<parallel>], iteration_bounds = array<i64: 1>, scalar_prefetch = 0 : i64, scratch_operands = 0 : i64, tpu.core_type = #tpu.core_type<tc>, window_params = [{transform_indices = @transform_0, window_bounds = array<i64: 4, 128>}, {pipeline_mode = #tpu.pipeline_mode<synchronous>, transform_indices = @transform_1, window_bounds = array<i64: 32, 4>}, {pipeline_mode = #tpu.pipeline_mode<synchronous>, transform_indices = @transform_2, window_bounds = array<i64: 32, 1>}, {pipeline_mode = #tpu.pipeline_mode<synchronous>, transform_indices = @transform_3, window_bounds = array<i64: 6, 32>}, {pipeline_mode = #tpu.pipeline_mode<synchronous>, transform_indices = @transform_4, window_bounds = array<i64: 6, 1>}, {transform_indices = @transform_5, window_bounds = array<i64: 6, 128>}]} {
    %c0 = arith.constant 0 : index
    %c0_0 = arith.constant 0 : index
    %0 = vector.load %arg1[%c0, %c0_0] : memref<4x128xf32, #tpu.memory_space<vmem>>, vector<4x128xf32>
    %c0_1 = arith.constant 0 : index
    %c0_2 = arith.constant 0 : index
    %1 = vector.load %arg2[%c0_1, %c0_2] : memref<32x4xf32, #tpu.memory_space<vmem>>, vector<32x4xf32>
    %cst = arith.constant dense<0.000000e+00> : vector<32x128xf32>
    %2 = tpu.matmul %1, %0, %cst {dimension_numbers = #tpu.dot_dimension_numbers<[1], [0], [0], [1], [0, 0, 1, 1], [], []>} : vector<32x4xf32>, vector<4x128xf32>, vector<32x128xf32> -> vector<32x128xf32>
    %c0_3 = arith.constant 0 : index
    %c0_4 = arith.constant 0 : index
    %3 = vector.load %arg3[%c0_3, %c0_4] : memref<32x1xf32, #tpu.memory_space<vmem>>, vector<32x1xf32>
    %4 = vector.broadcast %3 : vector<32x1xf32> to vector<32x128xf32>
    %5 = arith.addf %2, %4 : vector<32x128xf32>
    %cst_5 = arith.constant 0.000000e+00 : f32
    %6 = vector.broadcast %cst_5 : f32 to vector<32x128xf32>
    %7 = arith.maximumf %5, %6 : vector<32x128xf32>
    %c0_6 = arith.constant 0 : index
    %c0_7 = arith.constant 0 : index
    %8 = vector.load %arg4[%c0_6, %c0_7] : memref<6x32xf32, #tpu.memory_space<vmem>>, vector<6x32xf32>
    %cst_8 = arith.constant dense<0.000000e+00> : vector<6x128xf32>
    %9 = tpu.matmul %8, %7, %cst_8 {dimension_numbers = #tpu.dot_dimension_numbers<[1], [0], [0], [1], [0, 0, 1, 1], [], []>} : vector<6x32xf32>, vector<32x128xf32>, vector<6x128xf32> -> vector<6x128xf32>
    %c0_9 = arith.constant 0 : index
    %c0_10 = arith.constant 0 : index
    %10 = vector.load %arg5[%c0_9, %c0_10] : memref<6x1xf32, #tpu.memory_space<vmem>>, vector<6x1xf32>
    %11 = vector.broadcast %10 : vector<6x1xf32> to vector<6x128xf32>
    %12 = arith.addf %9, %11 : vector<6x128xf32>
    %c0_11 = arith.constant 0 : index
    %c0_12 = arith.constant 0 : index
    %13 = vector.load %arg6[%c0_11, %c0_12] : memref<6x128xf32, #tpu.memory_space<vmem>>, vector<6x128xf32>
    tpu.vector_store %arg6[%c0_11, %c0_12], %12 {strides = array<i32>} : memref<6x128xf32, #tpu.memory_space<vmem>>, vector<6x128xf32>,
    return
  }
  func.func @transform_0(%arg0: i32) -> (i32, i32) {
    %c0_i32 = arith.constant 0 : i32
    %c0_i32_0 = arith.constant 0 : i32
    return %c0_i32, %arg0 : i32, i32
  }
  func.func @transform_1(%arg0: i32) -> (i32, i32) {
    %c0_i32 = arith.constant 0 : i32
    %c0_i32_0 = arith.constant 0 : i32
    %c0_i32_1 = arith.constant 0 : i32
    return %c0_i32, %c0_i32_0 : i32, i32
  }
  func.func @transform_2(%arg0: i32) -> (i32, i32) {
    %c0_i32 = arith.constant 0 : i32
    %c0_i32_0 = arith.constant 0 : i32
    %c0_i32_1 = arith.constant 0 : i32
    return %c0_i32, %c0_i32_0 : i32, i32
  }
  func.func @transform_3(%arg0: i32) -> (i32, i32) {
    %c0_i32 = arith.constant 0 : i32
    %c0_i32_0 = arith.constant 0 : i32
    %c0_i32_1 = arith.constant 0 : i32
    return %c0_i32, %c0_i32_0 : i32, i32
  }
  func.func @transform_4(%arg0: i32) -> (i32, i32) {
    %c0_i32 = arith.constant 0 : i32
    %c0_i32_0 = arith.constant 0 : i32
    %c0_i32_1 = arith.constant 0 : i32
    return %c0_i32, %c0_i32_0 : i32, i32
  }
  func.func @transform_5(%arg0: i32) -> (i32, i32) {
    %c0_i32 = arith.constant 0 : i32
    %c0_i32_0 = arith.constant 0 : i32
    return %c0_i32, %arg0 : i32, i32
  }
}

</mosaic_0001>

<llo_original>
// kernel: tpu_custom_call.1
$region0: #{tpu_custom_call.1}
  #allocation0 [shape = 'u32[]', space=smem, size = 0x4, offset = 0x4, fixed_abs, tag = 'smem constant byte address 0x4 - core index']
  #allocation1 [shape = 'u32[144,128]{1,0:T(1,128)}', space=vmem, size = 0x12000, scoped, tag = 'internal scratch']
  %s0 = inlined_call_operand.vmem [shape: f32[4,128], index: 0, kind: input, shape index: {}]
  %s1 = inlined_call_operand.vmem [shape: f32[32,4], index: 1, kind: input, shape index: {}]
  %s2 = inlined_call_operand.vmem [shape: f32[32,1], index: 2, kind: input, shape index: {}]
  %s3 = inlined_call_operand.vmem [shape: f32[6,32], index: 3, kind: input, shape index: {}]
  %s4 = inlined_call_operand.vmem [shape: f32[6,1], index: 4, kind: input, shape index: {}]
  %s5 = inlined_call_operand.hbm [shape: f32[6,128], index: 5, kind: output, shape index: {}]
  %s6 = sld [smem:[#allocation0]]
  $region30: #{tpu_custom_call.1} parent=0
    _
  %s8 = ssub.s32 1, %s6
  %s9 = scalar_select 0, %s8, %s6
  $region1: #{tpu_custom_call.1} parent=0
    #allocation2 [shape = 'u8[4096]{0}', space=vmem, size = 0x1000, scoped, tag = 'output window, operand 0, single buffered']
    #allocation3 [shape = 's32[1]{0}', space=sflag, size = 0x4, scoped, tag = 'scoped memory for tpu_custom_call.1']
    %10 = vsyncpa [#allocation3], 0
    // Predicated region
    $region2: #{tpu_custom_call.1} parent=1 // pred_check
      _
    $region3: #{tpu_custom_call.1} parent=1 // pred_check_branch
      %12 = sbr.rel (0) target = $region5
    $region4: #{tpu_custom_call.1} parent=1 // pred_region
      _
    $region5: #{tpu_custom_call.1} parent=1 // pred_fallthru
      _
    // Predicated region
    $region6: #{tpu_custom_call.1} parent=1 // pred_check
      _
    $region7: #{tpu_custom_call.1} parent=1 // pred_check_branch
      %14 = sbr.rel (0) target = $region9
    $region8: #{tpu_custom_call.1} parent=1 // pred_region
      _
    $region9: #{tpu_custom_call.1} parent=1 // pred_fallthru
      _
    // Predicated region
    $region10: #{tpu_custom_call.1} parent=1 // pred_check
      _
    $region11: #{tpu_custom_call.1} parent=1 // pred_check_branch
      %16 = sbr.rel (0) target = $region13
    $region12: #{tpu_custom_call.1} parent=1 // pred_region
      _
    $region13: #{tpu_custom_call.1} parent=1 // pred_fallthru
      _
    // Predicated region
    $region14: #{tpu_custom_call.1} parent=1 // pred_check
      _
    $region15: #{tpu_custom_call.1} parent=1 // pred_check_branch
      %18 = sbr.rel (0) target = $region17
    $region16: #{tpu_custom_call.1} parent=1 // pred_region
      _
    $region17: #{tpu_custom_call.1} parent=1 // pred_fallthru
      _
    // Predicated region
    $region18: #{tpu_custom_call.1} parent=1 // pred_check
      _
    $region19: #{tpu_custom_call.1} parent=1 // pred_check_branch
      %20 = sbr.rel (0) target = $region21
    $region20: #{tpu_custom_call.1} parent=1 // pred_region
      _
    $region21: #{tpu_custom_call.1} parent=1 // pred_fallthru
      _
    %v21 = vld [vmem:[%s0] sm:$0xf]
    %v22 = vld [vmem:[%s1] sm:$0xff]
    %v23 = vld [vmem:[%s1 + $0x8] sm:$0xff]
    %v24 = vld [vmem:[%s1 + $0x10] sm:$0xff]
    %v25 = vld [vmem:[%s1 + $0x18] sm:$0xff]
    %v26 = vld [vmem:[%s2] sm:$0xff]
    %v27 = vld [vmem:[%s2 + $0x8] sm:$0xff]
    %v28 = vld [vmem:[%s2 + $0x10] sm:$0xff]
    %v29 = vld [vmem:[%s2 + $0x18] sm:$0xff]
    %31 = vset.pattern.permute.xlu0 0
    %32 = vperm.xlu0 %31, %v26
    %v33 = vpop.permute.xlu0 %32
    %36 = vset.pattern.permute.xlu0 0
    %37 = vperm.xlu0 %36, %v27
    %v38 = vpop.permute.xlu0 %37
    %41 = vset.pattern.permute.xlu0 0
    %42 = vperm.xlu0 %41, %v28
    %v43 = vpop.permute.xlu0 %42
    %46 = vset.pattern.permute.xlu0 0
    %47 = vperm.xlu0 %46, %v29
    %v48 = vpop.permute.xlu0 %47
    %vm50 = vcmask 31744
    %v52 = vsel %vm50, %v22, 0
    %v55 = vsel %vm50, %v23, 0
    %v58 = vsel %vm50, %v24, 0
    %v61 = vsel %vm50, %v25, 0
    %vm63 = vcmask 1043456
    %v65 = vsel %vm63, %v21, 0
    %67 = vmatprep.subr.mxu0 0.0
    %68 = vmatpush1.msra.mxu0 %v65
    %69 = vmatprep.subr.mxu0 0.0
    %70 = vmatpush1.msra.mxu0 0.0
    %71 = vmatprep.subr.mxu0 0.0
    %72 = vmatpush1.msra.mxu0 0.0
    %73 = vmatprep.subr.mxu0 0.0
    %74 = vmatpush1.msra.mxu0 0.0
    %75 = vmatprep.subr.mxu0 0.0
    %76 = vmatpush1.msra.mxu0 0.0
    %77 = vmatprep.subr.mxu0 0.0
    %78 = vmatpush1.msra.mxu0 0.0
    %79 = vmatprep.subr.mxu0 0.0
    %80 = vmatpush1.msra.mxu0 0.0
    %81 = vmatprep.subr.mxu0 0.0
    %82 = vmatpush1.msra.mxu0 0.0
    %83 = vmatprep.subr.mxu0 0.0
    %84 = vmatpush1.msra.mxu0 0.0
    %85 = vmatprep.subr.mxu0 0.0
    %86 = vmatpush1.msra.mxu0 0.0
    %87 = vmatprep.subr.mxu0 0.0
    %88 = vmatpush1.msra.mxu0 0.0
    %89 = vmatprep.subr.mxu0 0.0
    %90 = vmatpush1.msra.mxu0 0.0
    %91 = vmatprep.subr.mxu0 0.0
    %92 = vmatpush1.msra.mxu0 0.0
    %93 = vmatprep.subr.mxu0 0.0
    %94 = vmatpush1.msra.mxu0 0.0
    %95 = vmatprep.subr.mxu0 0.0
    %96 = vmatpush1.msra.mxu0 0.0
    %97 = vmatprep.subr.mxu0 0.0
    %98 = vmatpush1.msra.mxu0 0.0
    %99 = vmatprep.subr.mxu0 0.0
    %100 = vmatpush1.msra.mxu0 0.0
    %101 = vmatprep.subr.mxu0 0.0
    %102 = vmatpush1.msra.mxu0 0.0
    %103 = vmatprep.subr.mxu0 0.0
    %104 = vmatpush1.msra.mxu0 0.0
    %105 = vmatprep.subr.mxu0 0.0
    %106 = vmatpush1.msra.mxu0 0.0
    %107 = vmatprep.subr.mxu0 0.0
    %108 = vmatpush1.msra.mxu0 0.0
    %109 = vmatprep.subr.mxu0 0.0
    %110 = vmatpush1.msra.mxu0 0.0
    %111 = vmatprep.subr.mxu0 0.0
    %112 = vmatpush1.msra.mxu0 0.0
    %113 = vmatprep.subr.mxu0 0.0
    %114 = vmatpush1.msra.mxu0 0.0
    %115 = vmatprep.subr.mxu0 0.0
    %116 = vmatpush1.msra.mxu0 0.0
    %117 = vmatprep.subr.mxu0 0.0
    %118 = vmatpush1.msra.mxu0 0.0
    %119 = vmatprep.subr.mxu0 0.0
    %120 = vmatpush1.msra.mxu0 0.0
    %121 = vmatprep.subr.mxu0 0.0
    %122 = vmatpush1.msra.mxu0 0.0
    %123 = vmatprep.subr.mxu0 0.0
    %124 = vmatpush1.msra.mxu0 0.0
    %125 = vmatprep.subr.mxu0 0.0
    %126 = vmatpush1.msra.mxu0 0.0
    %127 = vmatprep.subr.mxu0 0.0
    %128 = vmatpush1.msra.mxu0 0.0
    %129 = vmatprep.subr.mxu0 0.0
    %130 = vmatpush1.msra.mxu0 0.0
    %131 = vmatprep.mubr.f32.mxu0 0.0
    %132 = vmatmul.mubr.f32.gmra.mrb[0].mxu0 %v52
    %v133 = vpop.f32.mrb[0].mxu0
    %v134 = vadd.f32 %v33, %v133
    %v135 = vpop.f32.mrb[0].mxu0
    %136 = vmatprep.mubr.f32.mxu0 0.0
    %137 = vmatmul.mubr.f32.gmra.mrb[0].mxu0 %v55
    %v138 = vpop.f32.mrb[0].mxu0
    %v139 = vadd.f32 %v38, %v138
    %v140 = vpop.f32.mrb[0].mxu0
    %141 = vmatprep.mubr.f32.mxu0 0.0
    %142 = vmatmul.mubr.f32.gmra.mrb[0].mxu0 %v58
    %v143 = vpop.f32.mrb[0].mxu0
    %v144 = vadd.f32 %v43, %v143
    %v145 = vpop.f32.mrb[0].mxu0
    %146 = vmatprep.mubr.f32.mxu0 0.0
    %147 = vmatmul.mubr.f32.gmra.mrb[0].mxu0 %v61
    %v148 = vpop.f32.mrb[0].mxu0
    %v149 = vadd.f32 %v48, %v148
    %v150 = vpop.f32.mrb[0].mxu0
    %151 = vdwg.mxu0
    %v152 = vmax.f32 %v134, 0.0
    %v153 = vmax.f32 %v139, 0.0
    %v154 = vmax.f32 %v144, 0.0
    %v155 = vmax.f32 %v149, 0.0
    %v156 = vld [vmem:[%s3] sm:$0x3f]
    %v157 = vld [vmem:[%s4] sm:$0x3f]
    %159 = vset.pattern.permute.xlu0 0
    %160 = vperm.xlu0 %159, %v157
    %v161 = vpop.permute.xlu0 %160
    %vm163 = vcmask 261120
    %v165 = vsel %vm163, %v156, 0
    %167 = vmatprep.subr.mxu0 0.0
    %168 = vmatpush1.msra.mxu0 %v152
    %169 = vmatprep.subr.mxu0 0.0
    %170 = vmatpush1.msra.mxu0 %v153
    %171 = vmatprep.subr.mxu0 0.0
    %172 = vmatpush1.msra.mxu0 %v154
    %173 = vmatprep.subr.mxu0 0.0
    %174 = vmatpush1.msra.mxu0 %v155
    %175 = vmatprep.subr.mxu0 0.0
    %176 = vmatpush1.msra.mxu0 0.0
    %177 = vmatprep.subr.mxu0 0.0
    %178 = vmatpush1.msra.mxu0 0.0
    %179 = vmatprep.subr.mxu0 0.0
    %180 = vmatpush1.msra.mxu0 0.0
    %181 = vmatprep.subr.mxu0 0.0
    %182 = vmatpush1.msra.mxu0 0.0
    %183 = vmatprep.subr.mxu0 0.0
    %184 = vmatpush1.msra.mxu0 0.0
    %185 = vmatprep.subr.mxu0 0.0
    %186 = vmatpush1.msra.mxu0 0.0
    %187 = vmatprep.subr.mxu0 0.0
    %188 = vmatpush1.msra.mxu0 0.0
    %189 = vmatprep.subr.mxu0 0.0
    %190 = vmatpush1.msra.mxu0 0.0
    %191 = vmatprep.subr.mxu0 0.0
    %192 = vmatpush1.msra.mxu0 0.0
    %193 = vmatprep.subr.mxu0 0.0
    %194 = vmatpush1.msra.mxu0 0.0
    %195 = vmatprep.subr.mxu0 0.0
    %196 = vmatpush1.msra.mxu0 0.0
    %197 = vmatprep.subr.mxu0 0.0
    %198 = vmatpush1.msra.mxu0 0.0
    %199 = vmatprep.subr.mxu0 0.0
    %200 = vmatpush1.msra.mxu0 0.0
    %201 = vmatprep.subr.mxu0 0.0
    %202 = vmatpush1.msra.mxu0 0.0
    %203 = vmatprep.subr.mxu0 0.0
    %204 = vmatpush1.msra.mxu0 0.0
    %205 = vmatprep.subr.mxu0 0.0
    %206 = vmatpush1.msra.mxu0 0.0
    %207 = vmatprep.subr.mxu0 0.0
    %208 = vmatpush1.msra.mxu0 0.0
    %209 = vmatprep.subr.mxu0 0.0
    %210 = vmatpush1.msra.mxu0 0.0
    %211 = vmatprep.subr.mxu0 0.0
    %212 = vmatpush1.msra.mxu0 0.0
    %213 = vmatprep.subr.mxu0 0.0
    %214 = vmatpush1.msra.mxu0 0.0
    %215 = vmatprep.subr.mxu0 0.0
    %216 = vmatpush1.msra.mxu0 0.0
    %217 = vmatprep.subr.mxu0 0.0
    %218 = vmatpush1.msra.mxu0 0.0
    %219 = vmatprep.subr.mxu0 0.0
    %220 = vmatpush1.msra.mxu0 0.0
    %221 = vmatprep.subr.mxu0 0.0
    %222 = vmatpush1.msra.mxu0 0.0
    %223 = vmatprep.subr.mxu0 0.0
    %224 = vmatpush1.msra.mxu0 0.0
    %225 = vmatprep.subr.mxu0 0.0
    %226 = vmatpush1.msra.mxu0 0.0
    %227 = vmatprep.subr.mxu0 0.0
    %228 = vmatpush1.msra.mxu0 0.0
    %229 = vmatprep.subr.mxu0 0.0
    %230 = vmatpush1.msra.mxu0 0.0
    %231 = vmatprep.mubr.f32.mxu0 0.0
    %232 = vmatmul.mubr.f32.gmra.mrb[0].mxu0 %v165
    %v233 = vpop.f32.mrb[0].mxu0
    %v234 = vadd.f32 %v161, %v233
    %v235 = vpop.f32.mrb[0].mxu0
    %236 = vdwg.mxu0
    %237 = vst [vmem:[#allocation2] sm:$0x3f] %v234
    // Predicated region
    $region22: #{tpu_custom_call.1} parent=1 // pred_check
      _
    $region23: #{tpu_custom_call.1} parent=1 // pred_check_branch
      %239 = sbr.rel (0) target = $region25
    $region24: #{tpu_custom_call.1} parent=1 // pred_region
      %s241 = ssub.s32 128, 128
      %242 = vsyncadd [#allocation3], %s241
      %s244 = sshll.u32 [#allocation2], 4
      %s245 = int_to_ptr.vmem [resolvable:$true] %s244
      %247 = dma.vmem_to_hbm [thread:$0]  %s245, 128, %s5, [#allocation3]
    $region25: #{tpu_custom_call.1} parent=1 // pred_fallthru
      _
    // Predicated region
    $region26: #{tpu_custom_call.1} parent=1 // pred_check
      _
    $region27: #{tpu_custom_call.1} parent=1 // pred_check_branch
      %249 = sbr.rel (0) target = $region29
    $region28: #{tpu_custom_call.1} parent=1 // pred_region
      %250 = dma.done [#allocation3], 128
    $region29: #{tpu_custom_call.1} parent=1 // pred_fallthru
      _
    %251 = vsyncpa [#allocation3], 1

</llo_original>
